<compile_context>
chip_gen: v7x
topology: tpu7x:2x2x1
jax: 0.10.0
libtpu: 0.0.40
codegen_flags: <defaults>
</compile_context>

<pallas_src>
import functools

import jax
import jax.numpy as jnp
from jax.experimental import pallas as pl
from jax.experimental.pallas import tpu as pltpu

K_IN = 10   # Linear in_features
N_OUT = 5   # Linear out_features
_SMALL_BATCH_BYPASS = 256


def _linear_clamp_kernel(x_ref, w_ref, b_ref, o_ref, *, min_val, max_val):
    # matmul (MXU) + bias add + clamp (VPU) on one (TM, 5) row tile
    x = x_ref[...]                       # (TM, 10)
    w = w_ref[...]                       # (10, 5), resident across grid
    b = b_ref[...]                       # (1, 5),  resident across grid
    y = jnp.dot(x, w, preferred_element_type=jnp.float32) + b
    y = jnp.maximum(y, min_val)          # clamp_min
    y = jnp.minimum(y, max_val)          # clamp_max
    o_ref[...] = y.astype(o_ref.dtype)


def _choose_tm(B, tm_cap):
    # Row tile: multiple of 8 (f32 sublane). For large B keep >= 2 grid steps
    # so v7x's second TensorCore gets work; cap so VMEM stays tiny.
    half = ((pl.cdiv(B, 2) + 7) // 8) * 8
    return int(min(tm_cap, max(8, half)))


def _linear_clamp_pallas(x, w, b, min_val, max_val, *, tm_cap=4096):
    B, k_in = x.shape
    _, n_out = w.shape
    b2 = b.reshape(1, n_out)

    TM = _choose_tm(B, tm_cap)
    grid = (pl.cdiv(B, TM),)

    kernel = functools.partial(
        _linear_clamp_kernel, min_val=min_val, max_val=max_val
    )

    return pl.pallas_call(
        kernel,
        out_shape=jax.ShapeDtypeStruct((B, n_out), jnp.float32),
        grid=grid,
        in_specs=[
            pl.BlockSpec((TM, k_in), lambda i: (i, 0)),    # x: streamed row tiles
            pl.BlockSpec((k_in, n_out), lambda i: (0, 0)),  # W: resident (~200 B)
            pl.BlockSpec((1, n_out), lambda i: (0, 0)),     # b: resident
        ],
        out_specs=pl.BlockSpec((TM, n_out), lambda i: (i, 0)),
        compiler_params=pltpu.CompilerParams(
            dimension_semantics=("parallel",)
        ),
    )(x, w, b2)


def linear_clamp(x, w, b, min_val, max_val, *, tm_cap=4096, force_pallas=False):
    """x: (B, 10), w: (10, 5), b: (5,). Returns clamp(x @ w + b) of shape (B, 5)."""
    B = x.shape[0]
    if not force_pallas and B < _SMALL_BATCH_BYPASS:
        # ~10^2-10^4 FLOPs: XLA's fused dot+clip beats a pallas_call launch.
        return jnp.clip(x @ w + b.reshape(1, -1), min_val, max_val)
    return _linear_clamp_pallas(x, w, b, min_val, max_val, tm_cap=tm_cap)


if __name__ == "__main__":
    # clamp bounds (module globals min_val / max_val in the original script)
    min_val = -0.5
    max_val = 0.5

    key = jax.random.PRNGKey(0)
    kx, kw, kb, kx2 = jax.random.split(key, 4)

    # input consistent with the module: x1 = torch.randn(1, 10)
    x1 = jax.random.normal(kx, (1, 10), dtype=jnp.float32)

    # deterministic Linear(10, 5) parameters (Kaiming-uniform-ish range)
    bound = 1.0 / jnp.sqrt(10.0)
    w = jax.random.uniform(kw, (K_IN, N_OUT), jnp.float32, -bound, bound)  # (in, out)
    b = jax.random.uniform(kb, (N_OUT,), jnp.float32, -bound, bound)

    # B = 1 path (matches the module spec) — force the Pallas kernel to run once
    out = linear_clamp(x1, w, b, min_val, max_val, force_pallas=True)
    out = jax.block_until_ready(out)
    ref = jnp.clip(x1 @ w + b, min_val, max_val)
    assert out.shape == (1, N_OUT)
    assert jnp.allclose(out, ref, atol=1e-5), (out, ref)

    # dispatch path at B = 1 (bypass) must agree too
    out_bypass = jax.block_until_ready(linear_clamp(x1, w, b, min_val, max_val))
    assert jnp.allclose(out_bypass, ref, atol=1e-5)

    # batched path (exercises the row-tiled grid with >1 grid step)
    xb = jax.random.normal(kx2, (1000, 10), dtype=jnp.float32)
    outb = linear_clamp(xb, w, b, min_val, max_val)
    outb = jax.block_until_ready(outb)
    refb = jnp.clip(xb @ w + b, min_val, max_val)
    assert outb.shape == (1000, N_OUT)
    assert jnp.allclose(outb, refb, atol=1e-5)

    print("KERNEL_OK")
</pallas_src>

<mosaic_0001>
module attributes {stable_mosaic.version = 11 : i64} {
  func.func @_linear_clamp_kernel(%arg0: i32, %arg1: memref<8x10xf32, #tpu.memory_space<vmem>>, %arg2: memref<10x5xf32, #tpu.memory_space<vmem>>, %arg3: memref<1x5xf32, #tpu.memory_space<vmem>>, %arg4: memref<8x5xf32, #tpu.memory_space<vmem>>) attributes {dimension_semantics = [#tpu.dimension_semantics<parallel>], iteration_bounds = array<i64: 1>, scalar_prefetch = 0 : i64, scratch_operands = 0 : i64, tpu.core_type = #tpu.core_type<tc>, window_params = [{transform_indices = @transform_0, window_bounds = array<i64: 8, 10>}, {pipeline_mode = #tpu.pipeline_mode<synchronous>, transform_indices = @transform_1, window_bounds = array<i64: 10, 5>}, {pipeline_mode = #tpu.pipeline_mode<synchronous>, transform_indices = @transform_2, window_bounds = array<i64: 1, 5>}, {transform_indices = @transform_3, window_bounds = array<i64: 8, 5>}]} {
    %c0 = arith.constant 0 : index
    %c0_0 = arith.constant 0 : index
    %0 = vector.load %arg1[%c0, %c0_0] : memref<8x10xf32, #tpu.memory_space<vmem>>, vector<8x10xf32>
    %c0_1 = arith.constant 0 : index
    %c0_2 = arith.constant 0 : index
    %1 = vector.load %arg2[%c0_1, %c0_2] : memref<10x5xf32, #tpu.memory_space<vmem>>, vector<10x5xf32>
    %c0_3 = arith.constant 0 : index
    %c0_4 = arith.constant 0 : index
    %2 = vector.load %arg3[%c0_3, %c0_4] : memref<1x5xf32, #tpu.memory_space<vmem>>, vector<1x5xf32>
    %cst = arith.constant dense<0.000000e+00> : vector<8x5xf32>
    %3 = tpu.matmul %0, %1, %cst {dimension_numbers = #tpu.dot_dimension_numbers<[1], [0], [0], [1], [0, 0, 1, 1], [], []>} : vector<8x10xf32>, vector<10x5xf32>, vector<8x5xf32> -> vector<8x5xf32>
    %4 = vector.broadcast %2 : vector<1x5xf32> to vector<8x5xf32>
    %5 = arith.addf %3, %4 : vector<8x5xf32>
    %cst_5 = arith.constant -5.000000e-01 : f32
    %6 = vector.broadcast %cst_5 : f32 to vector<8x5xf32>
    %7 = arith.maximumf %5, %6 : vector<8x5xf32>
    %cst_6 = arith.constant 5.000000e-01 : f32
    %8 = vector.broadcast %cst_6 : f32 to vector<8x5xf32>
    %9 = arith.minimumf %7, %8 : vector<8x5xf32>
    %c0_7 = arith.constant 0 : index
    %c0_8 = arith.constant 0 : index
    %10 = vector.load %arg4[%c0_7, %c0_8] : memref<8x5xf32, #tpu.memory_space<vmem>>, vector<8x5xf32>
    tpu.vector_store %arg4[%c0_7, %c0_8], %9 {strides = array<i32>} : memref<8x5xf32, #tpu.memory_space<vmem>>, vector<8x5xf32>,
    return
  }
  func.func @transform_0(%arg0: i32) -> (i32, i32) {
    %c0_i32 = arith.constant 0 : i32
    %c0_i32_0 = arith.constant 0 : i32
    return %arg0, %c0_i32 : i32, i32
  }
  func.func @transform_1(%arg0: i32) -> (i32, i32) {
    %c0_i32 = arith.constant 0 : i32
    %c0_i32_0 = arith.constant 0 : i32
    %c0_i32_1 = arith.constant 0 : i32
    return %c0_i32, %c0_i32_0 : i32, i32
  }
  func.func @transform_2(%arg0: i32) -> (i32, i32) {
    %c0_i32 = arith.constant 0 : i32
    %c0_i32_0 = arith.constant 0 : i32
    %c0_i32_1 = arith.constant 0 : i32
    return %c0_i32, %c0_i32_0 : i32, i32
  }
  func.func @transform_3(%arg0: i32) -> (i32, i32) {
    %c0_i32 = arith.constant 0 : i32
    %c0_i32_0 = arith.constant 0 : i32
    return %arg0, %c0_i32 : i32, i32
  }
}

</mosaic_0001>

<llo_original>
// kernel: tpu_custom_call.1
$region0: #{tpu_custom_call.1}
  #allocation0 [shape = 'u32[]', space=smem, size = 0x4, offset = 0x4, fixed_abs, tag = 'smem constant byte address 0x4 - core index']
  #allocation1 [shape = 'u32[144,128]{1,0:T(1,128)}', space=vmem, size = 0x12000, scoped, tag = 'internal scratch']
  %s0 = inlined_call_operand.vmem [shape: f32[1,10], index: 0, kind: input, shape index: {}]
  %s1 = inlined_call_operand.vmem [shape: f32[10,5], index: 1, kind: input, shape index: {}]
  %s2 = inlined_call_operand.vmem [shape: f32[1,5], index: 2, kind: input, shape index: {}]
  %s3 = inlined_call_operand.hbm [shape: f32[1,5], index: 3, kind: output, shape index: {}]
  %s4 = sld [smem:[#allocation0]]
  $region22: #{tpu_custom_call.1} parent=0
    _
  %s6 = ssub.s32 1, %s4
  %s7 = scalar_select 0, %s6, %s4
  $region1: #{tpu_custom_call.1} parent=0
    #allocation2 [shape = 'u8[4096]{0}', space=vmem, size = 0x1000, scoped, tag = 'output window, operand 0, single buffered']
    #allocation3 [shape = 's32[1]{0}', space=sflag, size = 0x4, scoped, tag = 'scoped memory for tpu_custom_call.1']
    %8 = vsyncpa [#allocation3], 0
    // Predicated region
    $region2: #{tpu_custom_call.1} parent=1 // pred_check
      _
    $region3: #{tpu_custom_call.1} parent=1 // pred_check_branch
      %10 = sbr.rel (0) target = $region5
    $region4: #{tpu_custom_call.1} parent=1 // pred_region
      _
    $region5: #{tpu_custom_call.1} parent=1 // pred_fallthru
      _
    // Predicated region
    $region6: #{tpu_custom_call.1} parent=1 // pred_check
      _
    $region7: #{tpu_custom_call.1} parent=1 // pred_check_branch
      %12 = sbr.rel (0) target = $region9
    $region8: #{tpu_custom_call.1} parent=1 // pred_region
      _
    $region9: #{tpu_custom_call.1} parent=1 // pred_fallthru
      _
    // Predicated region
    $region10: #{tpu_custom_call.1} parent=1 // pred_check
      _
    $region11: #{tpu_custom_call.1} parent=1 // pred_check_branch
      %14 = sbr.rel (0) target = $region13
    $region12: #{tpu_custom_call.1} parent=1 // pred_region
      _
    $region13: #{tpu_custom_call.1} parent=1 // pred_fallthru
      _
    %v15 = vld [vmem:[%s0] sm:$0xff]
    %v16 = vld [vmem:[%s1] sm:$0xff]
    %v17 = vld [vmem:[%s1 + $0x8] sm:$0x3]
    %v18 = vld [vmem:[%s2] sm:$0x1]
    %v20 = vlaneseq
    %v21 = vshrl.u32 %v20, 7
    %v22 = vsub.s32 0, %v21
    %v23 = vrot.slane %v18, %v22
    %vm25 = vcmask 80896
    %v27 = vsel %vm25, %v15, 0
    %vm29 = vcmask 1041408
    %v31 = vsel %vm29, %v17, 0
    %33 = vmatprep.subr.mxu0 0.0
    %34 = vmatpush1.msra.mxu0 %v16
    %35 = vmatprep.subr.mxu0 0.0
    %36 = vmatpush1.msra.mxu0 %v31
    %37 = vmatprep.subr.mxu0 0.0
    %38 = vmatpush1.msra.mxu0 0.0
    %39 = vmatprep.subr.mxu0 0.0
    %40 = vmatpush1.msra.mxu0 0.0
    %41 = vmatprep.subr.mxu0 0.0
    %42 = vmatpush1.msra.mxu0 0.0
    %43 = vmatprep.subr.mxu0 0.0
    %44 = vmatpush1.msra.mxu0 0.0
    %45 = vmatprep.subr.mxu0 0.0
    %46 = vmatpush1.msra.mxu0 0.0
    %47 = vmatprep.subr.mxu0 0.0
    %48 = vmatpush1.msra.mxu0 0.0
    %49 = vmatprep.subr.mxu0 0.0
    %50 = vmatpush1.msra.mxu0 0.0
    %51 = vmatprep.subr.mxu0 0.0
    %52 = vmatpush1.msra.mxu0 0.0
    %53 = vmatprep.subr.mxu0 0.0
    %54 = vmatpush1.msra.mxu0 0.0
    %55 = vmatprep.subr.mxu0 0.0
    %56 = vmatpush1.msra.mxu0 0.0
    %57 = vmatprep.subr.mxu0 0.0
    %58 = vmatpush1.msra.mxu0 0.0
    %59 = vmatprep.subr.mxu0 0.0
    %60 = vmatpush1.msra.mxu0 0.0
    %61 = vmatprep.subr.mxu0 0.0
    %62 = vmatpush1.msra.mxu0 0.0
    %63 = vmatprep.subr.mxu0 0.0
    %64 = vmatpush1.msra.mxu0 0.0
    %65 = vmatprep.subr.mxu0 0.0
    %66 = vmatpush1.msra.mxu0 0.0
    %67 = vmatprep.subr.mxu0 0.0
    %68 = vmatpush1.msra.mxu0 0.0
    %69 = vmatprep.subr.mxu0 0.0
    %70 = vmatpush1.msra.mxu0 0.0
    %71 = vmatprep.subr.mxu0 0.0
    %72 = vmatpush1.msra.mxu0 0.0
    %73 = vmatprep.subr.mxu0 0.0
    %74 = vmatpush1.msra.mxu0 0.0
    %75 = vmatprep.subr.mxu0 0.0
    %76 = vmatpush1.msra.mxu0 0.0
    %77 = vmatprep.subr.mxu0 0.0
    %78 = vmatpush1.msra.mxu0 0.0
    %79 = vmatprep.subr.mxu0 0.0
    %80 = vmatpush1.msra.mxu0 0.0
    %81 = vmatprep.subr.mxu0 0.0
    %82 = vmatpush1.msra.mxu0 0.0
    %83 = vmatprep.subr.mxu0 0.0
    %84 = vmatpush1.msra.mxu0 0.0
    %85 = vmatprep.subr.mxu0 0.0
    %86 = vmatpush1.msra.mxu0 0.0
    %87 = vmatprep.subr.mxu0 0.0
    %88 = vmatpush1.msra.mxu0 0.0
    %89 = vmatprep.subr.mxu0 0.0
    %90 = vmatpush1.msra.mxu0 0.0
    %91 = vmatprep.subr.mxu0 0.0
    %92 = vmatpush1.msra.mxu0 0.0
    %93 = vmatprep.subr.mxu0 0.0
    %94 = vmatpush1.msra.mxu0 0.0
    %95 = vmatprep.subr.mxu0 0.0
    %96 = vmatpush1.msra.mxu0 0.0
    %97 = vmatprep.mubr.f32.mxu0 0.0
    %98 = vmatmul.mubr.f32.gmra.mrb[0].mxu0 %v27
    %v99 = vpop.f32.mrb[0].mxu0
    %v100 = vadd.f32 %v23, %v99
    %v101 = vpop.f32.mrb[0].mxu0
    %102 = vdwg.mxu0
    %v103 = vmax.f32 %v100, -0.5
    %v104 = vmin.f32 %v103, 0.5
    %vm105 = vcmask 39936
    %106 = vst.msk [vmem:[#allocation2] sm:$0xff] %vm105, %v104
    // Predicated region
    $region14: #{tpu_custom_call.1} parent=1 // pred_check
      _
    $region15: #{tpu_custom_call.1} parent=1 // pred_check_branch
      %108 = sbr.rel (0) target = $region17
    $region16: #{tpu_custom_call.1} parent=1 // pred_region
      %s110 = ssub.s32 128, 16
      %111 = vsyncadd [#allocation3], %s110
      %s112 = sshll.u32 [#allocation2], 4
      %s113 = int_to_ptr.vmem [resolvable:$true] %s112
      %118 = dma.vmem_to_hbm [thread:$0]  %s113, 16, %s3, [#allocation3], 16, 16, 1
    $region17: #{tpu_custom_call.1} parent=1 // pred_fallthru
      _
    // Predicated region
    $region18: #{tpu_custom_call.1} parent=1 // pred_check
      _
    $region19: #{tpu_custom_call.1} parent=1 // pred_check_branch
      %120 = sbr.rel (0) target = $region21
    $region20: #{tpu_custom_call.1} parent=1 // pred_region
      %121 = dma.done [#allocation3], 128
    $region21: #{tpu_custom_call.1} parent=1 // pred_fallthru
      _
    %122 = vsyncpa [#allocation3], 1

</llo_original>
